<compile_context>
chip_gen: v5e
topology: v5e:2x2
jax: 0.10.0
libtpu: 0.0.40
codegen_flags: <defaults>
</compile_context>

<pallas_src>
import math

import jax
import jax.numpy as jnp
from jax.experimental import pallas as pl
from jax.experimental.pallas import tpu as pltpu

_LANES = 128
# ~4 MiB blocks per the review: keeps every dtype near the HBM roofline on
# v5e / v6e / v7x (per-grid-step overhead ~0.35 us).  Double-buffered in+out
# = 4 x 4 MiB = 16 MiB of scoped VMEM; vmem_limit_bytes is raised to 32 MiB
# so this fits on v5e (16 MiB default) and stays under v7x's 64 MiB physical.
_TARGET_TILE_BYTES = 4 * 1024 * 1024
_VMEM_LIMIT_BYTES = 32 * 1024 * 1024
# Row-tile multiple that satisfies sublane packing for f32(8)/bf16(16)/int8(32).
_ROW_PACK = 32


# --------------------------------------------------------------------------
# Path A: lane-aligned tiled copy through VMEM (total % 128 == 0).
# --------------------------------------------------------------------------
def _copy_kernel(x_ref, o_ref):
    # Contiguous copy of the current (tile_r, W) tile — the data movement
    # `x.contiguous()` performs.
    o_ref[...] = x_ref[...]


def _pallas_tiled_copy_2d(flat2d):
    """Copy a lane-dense (R, W) row-major slab (W a multiple of 128)."""
    R, W = flat2d.shape
    itemsize = flat2d.dtype.itemsize

    # Byte-sized tiles (not row-count-sized): ~4 MiB regardless of dtype.
    rows = _TARGET_TILE_BYTES // (W * itemsize)
    rows = max(_ROW_PACK, (rows // _ROW_PACK) * _ROW_PACK)
    tile_r = min(rows, R)  # tile_r == R (full dim) is always legal
    grid = (pl.cdiv(R, tile_r),)  # ragged last block is masked by Pallas

    spec = pl.BlockSpec((tile_r, W), lambda i: (i, 0))
    nbytes = R * W * itemsize

    return pl.pallas_call(
        _copy_kernel,
        out_shape=jax.ShapeDtypeStruct((R, W), flat2d.dtype),
        grid=grid,
        in_specs=[spec],
        out_specs=spec,
        compiler_params=pltpu.CompilerParams(
            # Independent tiles -> shard the single grid axis across the two
            # TensorCores on v7x (bandwidth-bound, so sub-2x, but free).
            dimension_semantics=("parallel",),
            vmem_limit_bytes=_VMEM_LIMIT_BYTES,
        ),
        cost_estimate=pl.CostEstimate(
            flops=0, transcendentals=0, bytes_accessed=2 * nbytes),
    )(flat2d)


# --------------------------------------------------------------------------
# Path B: unaligned total -> chunked HBM->HBM manual DMA (no pad, no slice,
# no VMEM staging).
# --------------------------------------------------------------------------
def _make_dma_copy_kernel(chunks):
    """chunks: tuple of static (start, size) element ranges of the flat buffer."""

    def kernel(x_hbm, o_hbm, sems):
        copies = []
        for idx, (start, size) in enumerate(chunks):
            cp = pltpu.make_async_copy(
                x_hbm.at[pl.ds(start, size)],
                o_hbm.at[pl.ds(start, size)],
                sems.at[idx],
            )
            cp.start()
            copies.append(cp)
        for cp in copies:
            cp.wait()

    return kernel


def _pallas_dma_copy_1d(flat):
    """Contiguous copy of an arbitrary-length 1-D buffer via HBM->HBM DMA."""
    (n,) = flat.shape
    nbytes = n * flat.dtype.itemsize

    # Up to 4 DMAs in flight (each >= ~4 MiB); tiny buffers use a single DMA.
    n_chunks = int(max(1, min(4, nbytes // _TARGET_TILE_BYTES)))
    n_chunks = min(n_chunks, n)
    base, rem = divmod(n, n_chunks)
    chunks, start = [], 0
    for i in range(n_chunks):
        size = base + (1 if i < rem else 0)
        chunks.append((start, size))
        start += size

    return pl.pallas_call(
        _make_dma_copy_kernel(tuple(chunks)),
        out_shape=jax.ShapeDtypeStruct((n,), flat.dtype),
        in_specs=[pl.BlockSpec(memory_space=pl.ANY)],
        out_specs=pl.BlockSpec(memory_space=pl.ANY),
        scratch_shapes=[pltpu.SemaphoreType.DMA((n_chunks,))],
        cost_estimate=pl.CostEstimate(
            flops=0, transcendentals=0, bytes_accessed=2 * nbytes),
    )(flat)


# --------------------------------------------------------------------------
# Module
# --------------------------------------------------------------------------
class Reshape:
    """JAX/Pallas equivalent of the PyTorch Reshape module.

    forward(x) = x.contiguous().view((-1,) + shape)

    By default this is a free metadata reshape (what XLA does for a
    contiguous row-major buffer).  Pass force_copy=True to realize the
    explicit `.contiguous()` as a Pallas bandwidth-bound copy.
    """

    def __init__(self, *shape, force_copy=False):
        self.shape = tuple(int(s) for s in shape)
        self.force_copy = force_copy

    def __call__(self, x):
        total = int(x.size)
        tail = math.prod(self.shape) if self.shape else 1
        assert total % tail == 0, "input size not divisible by target shape"
        lead = total // tail
        out_shape = (lead,) + self.shape

        if not self.force_copy:
            # Fast path: `.contiguous().view()` is pure metadata here.
            return jnp.reshape(x, out_shape)

        flat = jnp.reshape(x, (-1,))
        if total % _LANES == 0:
            # Widest lane-dense row that divides the buffer (minor win).
            w = next(w for w in (1024, 512, 256, _LANES) if total % w == 0)
            copied = _pallas_tiled_copy_2d(jnp.reshape(flat, (total // w, w)))
        else:
            # Unaligned tail: whole-buffer HBM->HBM DMA, no pad/slice passes.
            copied = _pallas_dma_copy_1d(flat)

        # `.view((-1,) + shape)` — free metadata reshape on the copied buffer.
        return jnp.reshape(copied, out_shape)


if __name__ == "__main__":
    key = jax.random.PRNGKey(0)

    # Small NCHW conv-style input: batch=2, channels=4, spatial=16x16.
    x = jax.random.normal(key, (2, 4, 16, 16), dtype=jnp.float32)
    ref = jnp.reshape(x, (-1, 8, 32))

    # Forced-copy path -> exercises the tiled Pallas copy kernel.
    out = jax.block_until_ready(Reshape(8, 32, force_copy=True)(x))
    assert out.shape == (8, 8, 32), out.shape
    assert out.dtype == x.dtype
    assert bool(jnp.array_equal(out, ref))

    # Default fast path (free metadata reshape, no kernel).
    out_fast = jax.block_until_ready(Reshape(8, 32)(x))
    assert out_fast.shape == (8, 8, 32)
    assert bool(jnp.array_equal(out_fast, ref))

    # Non-128-aligned total -> exercises the HBM->HBM manual-DMA copy kernel.
    x2 = jax.random.normal(jax.random.PRNGKey(0), (3, 5, 7), dtype=jnp.float32)
    out2 = jax.block_until_ready(Reshape(7, force_copy=True)(x2))
    ref2 = jnp.reshape(x2, (-1, 7))
    assert out2.shape == (15, 7), out2.shape
    assert bool(jnp.array_equal(out2, ref2))

    print("KERNEL_OK")
</pallas_src>

<mosaic_0001>
module attributes {stable_mosaic.version = 11 : i64} {
  func.func @_copy_kernel(%arg0: i32, %arg1: memref<2x1024xf32, #tpu.memory_space<vmem>>, %arg2: memref<2x1024xf32, #tpu.memory_space<vmem>>) attributes {dimension_semantics = [#tpu.dimension_semantics<parallel>], iteration_bounds = array<i64: 1>, scalar_prefetch = 0 : i64, scratch_operands = 0 : i64, tpu.core_type = #tpu.core_type<tc>, window_params = [{transform_indices = @transform_0, window_bounds = array<i64: 2, 1024>}, {transform_indices = @transform_1, window_bounds = array<i64: 2, 1024>}]} {
    %c0 = arith.constant 0 : index
    %c0_0 = arith.constant 0 : index
    %0 = vector.load %arg1[%c0, %c0_0] : memref<2x1024xf32, #tpu.memory_space<vmem>>, vector<2x1024xf32>
    %c0_1 = arith.constant 0 : index
    %c0_2 = arith.constant 0 : index
    %1 = vector.load %arg2[%c0_1, %c0_2] : memref<2x1024xf32, #tpu.memory_space<vmem>>, vector<2x1024xf32>
    tpu.vector_store %arg2[%c0_1, %c0_2], %0 {strides = array<i32>} : memref<2x1024xf32, #tpu.memory_space<vmem>>, vector<2x1024xf32>,
    return
  }
  func.func @transform_0(%arg0: i32) -> (i32, i32) {
    %c0_i32 = arith.constant 0 : i32
    %c0_i32_0 = arith.constant 0 : i32
    return %arg0, %c0_i32 : i32, i32
  }
  func.func @transform_1(%arg0: i32) -> (i32, i32) {
    %c0_i32 = arith.constant 0 : i32
    %c0_i32_0 = arith.constant 0 : i32
    return %arg0, %c0_i32 : i32, i32
  }
}

</mosaic_0001>

<llo_original>
// kernel: tpu_custom_call.1
$region0: #{tpu_custom_call.1}
  #allocation0 [shape = 'u32[]', space=smem, size = 0x4, offset = 0x4, fixed_abs, tag = 'smem constant byte address 0x4 - core index']
  #allocation1 [shape = 'u32[72,128]{1,0:T(1,128)}', space=vmem, size = 0x9000, scoped, tag = 'internal scratch']
  %s0 = inlined_call_operand.hbm [shape: f32[2,1024], index: 0, kind: input, shape index: {}]
  %s1 = inlined_call_operand.hbm [shape: f32[2,1024], index: 1, kind: output, shape index: {}]
  %s2 = sld [smem:[#allocation0]]
  $region18: #{tpu_custom_call.1} parent=0
    _
  %s4 = ssub.s32 1, %s2
  %s5 = scalar_select 0, %s4, %s2
  $region1: #{tpu_custom_call.1} parent=0
    #allocation2 [shape = 'u8[8192]{0}', space=vmem, size = 0x2000, scoped, tag = 'input window, operand 0, single buffered']
    #allocation3 [shape = 's32[1]{0}', space=sflag, size = 0x4, scoped, tag = 'scoped memory for tpu_custom_call.1']
    #allocation4 [shape = 's32[1]{0}', space=sflag, size = 0x4, scoped, tag = 'scoped memory for tpu_custom_call.1']
    #allocation5 [shape = 'u8[8192]{0}', space=vmem, size = 0x2000, scoped, tag = 'output window, operand 0, single buffered']
    %6 = vsyncpa [#allocation3], 0
    %7 = vsyncpa [#allocation4], 0
    // Predicated region
    $region2: #{tpu_custom_call.1} parent=1 // pred_check
      _
    $region3: #{tpu_custom_call.1} parent=1 // pred_check_branch
      %9 = sbr.rel (0) target = $region5
    $region4: #{tpu_custom_call.1} parent=1 // pred_region
      %11 = vsyncadd [#allocation3], 0
      %s13 = sshll.u32 %s0, 4
      %s14 = int_to_ptr.hbm [resolvable:$true] %s13
      %s15 = sshll.u32 [#allocation2], 4
      %s16 = int_to_ptr.vmem [resolvable:$true] %s15
      %18 = dma.hbm_to_vmem [thread:$0]  %s14, 256, %s16, [#allocation3]
    $region5: #{tpu_custom_call.1} parent=1 // pred_fallthru
      _
    // Predicated region
    $region6: #{tpu_custom_call.1} parent=1 // pred_check
      _
    $region7: #{tpu_custom_call.1} parent=1 // pred_check_branch
      %20 = sbr.rel (0) target = $region9
    $region8: #{tpu_custom_call.1} parent=1 // pred_region
      %22 = dma.done [#allocation3], 256
    $region9: #{tpu_custom_call.1} parent=1 // pred_fallthru
      _
    %v23 = vld [vmem:[#allocation2] sm:$0xff]
    %v24 = vld [vmem:[#allocation2 + $0x8] sm:$0xff]
    %25 = vst [vmem:[#allocation5] sm:$0xff] %v23
    %26 = vst [vmem:[#allocation5 + $0x8] sm:$0xff] %v24
    // Predicated region
    $region10: #{tpu_custom_call.1} parent=1 // pred_check
      _
    $region11: #{tpu_custom_call.1} parent=1 // pred_check_branch
      %28 = sbr.rel (0) target = $region13
    $region12: #{tpu_custom_call.1} parent=1 // pred_region
      %30 = vsyncadd [#allocation4], 0
      %s32 = sshll.u32 [#allocation5], 4
      %s33 = int_to_ptr.vmem [resolvable:$true] %s32
      %s34 = sshll.u32 %s1, 4
      %s35 = int_to_ptr.hbm [resolvable:$true] %s34
      %37 = dma.vmem_to_hbm [thread:$0]  %s33, 256, %s35, [#allocation4]
    $region13: #{tpu_custom_call.1} parent=1 // pred_fallthru
      _
    // Predicated region
    $region14: #{tpu_custom_call.1} parent=1 // pred_check
      _
    $region15: #{tpu_custom_call.1} parent=1 // pred_check_branch
      %39 = sbr.rel (0) target = $region17
    $region16: #{tpu_custom_call.1} parent=1 // pred_region
      %41 = dma.done [#allocation4], 256
    $region17: #{tpu_custom_call.1} parent=1 // pred_fallthru
      _
    %42 = vsyncpa [#allocation3], 1
    %43 = vsyncpa [#allocation4], 1

</llo_original>
